<compile_context>
chip_gen: v5e
topology: v5e:2x2
jax: 0.10.0
libtpu: 0.0.40
codegen_flags: <defaults>
</compile_context>

<pallas_src>
import functools

import jax
import jax.numpy as jnp
from jax import lax
from jax.experimental import pallas as pl

HIDDEN = 32          # hidden_dims
B, L = 2, 16         # (B, L, D) example input shape
EPS = 1e-5           # self.eps in the module


def _batchnorm_kernel(G, D, x_ref, p_ref, o_ref):
    """x_ref: (R, G*D) slab where R*G = B*L rows; p_ref: (2, D) = [gamma; beta]."""
    x = x_ref[...]                                     # (R, G*D)
    n = x.shape[0] * G                                 # total rows N = B*L
    inv_n = 1.0 / n

    # Single-pass per-lane statistics (XLU axis-0 reductions).
    s1 = jnp.sum(x, axis=0, keepdims=True)             # (1, G*D)  sum x
    s2 = jnp.sum(x * x, axis=0, keepdims=True)         # (1, G*D)  sum x^2

    # Fold the G lane-groups back onto the D features (tiny (1, D) VPU adds).
    sum_x = s1[:, 0:D]
    sum_x2 = s2[:, 0:D]
    for g in range(1, G):
        sum_x = sum_x + s1[:, g * D:(g + 1) * D]
        sum_x2 = sum_x2 + s2[:, g * D:(g + 1) * D]

    mu = sum_x * inv_n                                  # per-feature mean      (1, D)
    var = jnp.maximum(sum_x2 * inv_n - mu * mu, 0.0)    # population variance   (1, D)
    std = jnp.sqrt(var)                                 # torch.std(unbiased=False)
    # Mirrors the module exactly: denominator is sqrt(std + eps).  rsqrt → EUP.
    inv = lax.rsqrt(std + EPS)                          # (1, D)

    p = p_ref[...]                                      # (2, D) packed gamma/beta
    scale = p[0:1, :] * inv                             # gamma * inv           (1, D)
    bias = p[1:2, :] - mu * scale                       # beta - mu * scale     (1, D)
    if G > 1:
        scale = jnp.tile(scale, (1, G))                 # (1, G*D)
        bias = jnp.tile(bias, (1, G))

    # 2 VPU ops per element; unmasked, lane-dense (multiple-of-128) stores.
    o_ref[...] = x * scale + bias


@jax.jit
def batch_norm_forward(x, gamma, beta):
    """Training-mode BatchNorm forward for x of shape (B, L, D)."""
    Bn, Ln, D = x.shape
    N = Bn * Ln

    # Fold G row-groups into the lane axis so the last dim is 128-lane dense.
    G = 1
    if D < 128 and 128 % D == 0:
        G = 128 // D
        while G > 1 and N % G != 0:
            G //= 2
    R = N // G
    LD = G * D

    # Row-major reshape (B, L, D) -> (R, G*D): slab row r holds original rows
    # r*G .. r*G+G-1; lane l holds feature l % D.  Batch stats over dims (0,1)
    # make this exact.
    x2 = x.reshape(R, LD).astype(jnp.float32)
    params = jnp.stack([gamma.astype(jnp.float32),
                        beta.astype(jnp.float32)])      # (2, D) — one DMA

    out = pl.pallas_call(
        functools.partial(_batchnorm_kernel, G, D),
        out_shape=jax.ShapeDtypeStruct((R, LD), jnp.float32),
        # Single invocation (no grid): each block is the full array, so the
        # (8,128) divisibility rule is satisfied (and for the toy shape the
        # slab is exactly (8, 128) — one vreg).
        in_specs=[
            pl.BlockSpec((R, LD), lambda: (0, 0)),
            pl.BlockSpec((2, D), lambda: (0, 0)),
        ],
        out_specs=pl.BlockSpec((R, LD), lambda: (0, 0)),
    )(x2, params)

    return out.reshape(Bn, Ln, D)


if __name__ == "__main__":
    key = jax.random.PRNGKey(0)
    kx, kg = jax.random.split(key)
    x = jax.random.normal(kx, (B, L, HIDDEN), jnp.float32)
    gamma = jax.random.uniform(kg, (HIDDEN,), jnp.float32)   # nn.init.uniform_(gamma)
    beta = jnp.zeros((HIDDEN,), jnp.float32)                 # nn.init.zeros_(beta)

    out = jax.block_until_ready(batch_norm_forward(x, gamma, beta))

    # Pure-JAX reference mirroring the PyTorch math (training branch).
    mu_ref = x.mean(axis=(0, 1), keepdims=True)
    std_ref = jnp.sqrt(((x - mu_ref) ** 2).mean(axis=(0, 1)))  # torch.std(unbiased=False)
    ref = gamma * ((x - mu_ref) / jnp.sqrt(std_ref + EPS)) + beta

    assert out.shape == (B, L, HIDDEN) and out.dtype == jnp.float32
    assert bool(jnp.allclose(out, ref, atol=1e-4, rtol=1e-4)), "mismatch vs pure-JAX reference"
    print("KERNEL_OK")
</pallas_src>

<mosaic_0001>
module attributes {stable_mosaic.version = 11 : i64} {
  func.func @_batchnorm_kernel(%arg0: memref<8x128xf32, #tpu.memory_space<vmem>>, %arg1: memref<2x32xf32, #tpu.memory_space<vmem>>, %arg2: memref<8x128xf32, #tpu.memory_space<vmem>>) attributes {dimension_semantics = [], scalar_prefetch = 0 : i64, scratch_operands = 0 : i64, tpu.core_type = #tpu.core_type<tc>} {
    %c0 = arith.constant 0 : index
    %c0_0 = arith.constant 0 : index
    %0 = vector.load %arg0[%c0, %c0_0] : memref<8x128xf32, #tpu.memory_space<vmem>>, vector<8x128xf32>
    %cst = arith.constant dense<0.000000e+00> : vector<128xf32>
    %1 = vector.multi_reduction <add>, %0, %cst [0] : vector<8x128xf32> to vector<128xf32>
    %2 = vector.shape_cast %1 : vector<128xf32> to vector<1x128xf32>
    %3 = arith.mulf %0, %0 : vector<8x128xf32>
    %cst_1 = arith.constant dense<0.000000e+00> : vector<128xf32>
    %4 = vector.multi_reduction <add>, %3, %cst_1 [0] : vector<8x128xf32> to vector<128xf32>
    %5 = vector.shape_cast %4 : vector<128xf32> to vector<1x128xf32>
    %6 = vector.extract_strided_slice %2 {offsets = [0, 0], sizes = [1, 32], strides = [1, 1]} : vector<1x128xf32> to vector<1x32xf32>
    %7 = vector.extract_strided_slice %5 {offsets = [0, 0], sizes = [1, 32], strides = [1, 1]} : vector<1x128xf32> to vector<1x32xf32>
    %8 = vector.extract_strided_slice %2 {offsets = [0, 32], sizes = [1, 32], strides = [1, 1]} : vector<1x128xf32> to vector<1x32xf32>
    %9 = arith.addf %6, %8 : vector<1x32xf32>
    %10 = vector.extract_strided_slice %5 {offsets = [0, 32], sizes = [1, 32], strides = [1, 1]} : vector<1x128xf32> to vector<1x32xf32>
    %11 = arith.addf %7, %10 : vector<1x32xf32>
    %12 = vector.extract_strided_slice %2 {offsets = [0, 64], sizes = [1, 32], strides = [1, 1]} : vector<1x128xf32> to vector<1x32xf32>
    %13 = arith.addf %9, %12 : vector<1x32xf32>
    %14 = vector.extract_strided_slice %5 {offsets = [0, 64], sizes = [1, 32], strides = [1, 1]} : vector<1x128xf32> to vector<1x32xf32>
    %15 = arith.addf %11, %14 : vector<1x32xf32>
    %16 = vector.extract_strided_slice %2 {offsets = [0, 96], sizes = [1, 32], strides = [1, 1]} : vector<1x128xf32> to vector<1x32xf32>
    %17 = arith.addf %13, %16 : vector<1x32xf32>
    %18 = vector.extract_strided_slice %5 {offsets = [0, 96], sizes = [1, 32], strides = [1, 1]} : vector<1x128xf32> to vector<1x32xf32>
    %19 = arith.addf %15, %18 : vector<1x32xf32>
    %cst_2 = arith.constant 3.125000e-02 : f32
    %20 = vector.broadcast %cst_2 : f32 to vector<1x32xf32>
    %21 = arith.mulf %17, %20 : vector<1x32xf32>
    %cst_3 = arith.constant 3.125000e-02 : f32
    %22 = vector.broadcast %cst_3 : f32 to vector<1x32xf32>
    %23 = arith.mulf %19, %22 : vector<1x32xf32>
    %24 = arith.mulf %21, %21 : vector<1x32xf32>
    %25 = arith.subf %23, %24 : vector<1x32xf32>
    %cst_4 = arith.constant 0.000000e+00 : f32
    %26 = vector.broadcast %cst_4 : f32 to vector<1x32xf32>
    %27 = arith.maximumf %25, %26 : vector<1x32xf32>
    %28 = math.sqrt %27 : vector<1x32xf32>
    %cst_5 = arith.constant 9.99999974E-6 : f32
    %29 = vector.broadcast %cst_5 : f32 to vector<1x32xf32>
    %30 = arith.addf %28, %29 : vector<1x32xf32>
    %31 = math.rsqrt %30 : vector<1x32xf32>
    %c0_6 = arith.constant 0 : index
    %c0_7 = arith.constant 0 : index
    %32 = vector.load %arg1[%c0_6, %c0_7] : memref<2x32xf32, #tpu.memory_space<vmem>>, vector<2x32xf32>
    %33 = vector.extract_strided_slice %32 {offsets = [0, 0], sizes = [1, 32], strides = [1, 1]} : vector<2x32xf32> to vector<1x32xf32>
    %34 = arith.mulf %33, %31 : vector<1x32xf32>
    %35 = vector.extract_strided_slice %32 {offsets = [1, 0], sizes = [1, 32], strides = [1, 1]} : vector<2x32xf32> to vector<1x32xf32>
    %36 = arith.mulf %21, %34 : vector<1x32xf32>
    %37 = arith.subf %35, %36 : vector<1x32xf32>
    %38 = tpu.concatenate %34, %34, %34, %34 in 1 : vector<1x32xf32>, vector<1x32xf32>, vector<1x32xf32>, vector<1x32xf32> -> vector<1x128xf32>
    %39 = tpu.concatenate %37, %37, %37, %37 in 1 : vector<1x32xf32>, vector<1x32xf32>, vector<1x32xf32>, vector<1x32xf32> -> vector<1x128xf32>
    %40 = vector.broadcast %38 : vector<1x128xf32> to vector<8x128xf32>
    %41 = arith.mulf %0, %40 : vector<8x128xf32>
    %42 = vector.broadcast %39 : vector<1x128xf32> to vector<8x128xf32>
    %43 = arith.addf %41, %42 : vector<8x128xf32>
    %c0_8 = arith.constant 0 : index
    %c0_9 = arith.constant 0 : index
    %44 = vector.load %arg2[%c0_8, %c0_9] : memref<8x128xf32, #tpu.memory_space<vmem>>, vector<8x128xf32>
    tpu.vector_store %arg2[%c0_8, %c0_9], %43 {strides = array<i32>} : memref<8x128xf32, #tpu.memory_space<vmem>>, vector<8x128xf32>,
    return
  }
}

</mosaic_0001>

<llo_original>
// kernel: batch_norm_forward.1
$region0: #{batch_norm_forward.1}
  #allocation0 [shape = 'u32[]', space=smem, size = 0x4, offset = 0x4, fixed_abs, tag = 'smem constant byte address 0x4 - core index']
  #allocation1 [shape = 'u32[72,128]{1,0:T(1,128)}', space=vmem, size = 0x9000, scoped, tag = 'internal scratch']
  %s0 = inlined_call_operand.vmem [shape: f32[8,128], index: 0, kind: input, shape index: {}]
  %s1 = inlined_call_operand.vmem [shape: f32[2,32], index: 1, kind: input, shape index: {}]
  %s2 = inlined_call_operand.vmem [shape: f32[8,128], index: 2, kind: output, shape index: {}]
  %s3 = sld [smem:[#allocation0]]
  $region18: #{batch_norm_forward.1} parent=0
    _
  %s5 = ssub.s32 1, %s3
  %s6 = scalar_select 0, %s5, %s3
  // Predicated region
  $region2: #{batch_norm_forward.1} parent=0 // pred_check
    _
  $region3: #{batch_norm_forward.1} parent=0 // pred_check_branch
    %8 = sbr.rel (0) target = $region5
  $region4: #{batch_norm_forward.1} parent=0 // pred_region
    _
  $region5: #{batch_norm_forward.1} parent=0 // pred_fallthru
    _
  // Predicated region
  $region6: #{batch_norm_forward.1} parent=0 // pred_check
    _
  $region7: #{batch_norm_forward.1} parent=0 // pred_check_branch
    %10 = sbr.rel (0) target = $region9
  $region8: #{batch_norm_forward.1} parent=0 // pred_region
    _
  $region9: #{batch_norm_forward.1} parent=0 // pred_fallthru
    _
  %v11 = vld [vmem:[%s0] sm:$0xff]
  %v12 = vrot.slane %v11, 4
  %v13 = vadd.f32 %v11, %v12
  %v14 = vrot.slane %v13, 2
  %v15 = vadd.f32 %v13, %v14
  %v16 = vrot.slane %v15, 1
  %v17 = vadd.f32 %v15, %v16
  %v18 = vmul.f32 %v11, %v11
  %v19 = vrot.slane %v18, 4
  %v20 = vadd.f32 %v18, %v19
  %v21 = vrot.slane %v20, 2
  %v22 = vadd.f32 %v20, %v21
  %v23 = vrot.slane %v22, 1
  %v24 = vadd.f32 %v22, %v23
  %26 = vrot.lane.b32.xlu0 %v17, 96
  %v27 = vpop.permute.xlu0 %26
  %v29 = vadd.f32 %v17, %v27
  %31 = vrot.lane.b32.xlu0 %v24, 96
  %v32 = vpop.permute.xlu0 %31
  %v34 = vadd.f32 %v24, %v32
  %35 = vrot.lane.b32.xlu0 %v17, 64
  %v36 = vpop.permute.xlu0 %35
  %v38 = vadd.f32 %v29, %v36
  %39 = vrot.lane.b32.xlu0 %v24, 64
  %v40 = vpop.permute.xlu0 %39
  %v42 = vadd.f32 %v34, %v40
  %43 = vrot.lane.b32.xlu0 %v17, 32
  %v44 = vpop.permute.xlu0 %43
  %v46 = vadd.f32 %v38, %v44
  %47 = vrot.lane.b32.xlu0 %v24, 32
  %v48 = vpop.permute.xlu0 %47
  %v50 = vadd.f32 %v42, %v48
  %v51 = vmul.f32 %v46, 0.03125
  %v52 = vmul.f32 %v50, 0.03125
  %v53 = vmul.f32 %v51, %v51
  %v54 = vsub.f32 %v52, %v53
  %v55 = vmax.f32 %v54, 0.0
  %v56 = vrsqrt.pop %v55
  %v57 = vmul.f32 %v56, %v55
  %v58 = vmul.f32 %v57, %v56
  %v59 = vmul.f32 0.5, %v58
  %v60 = vsub.f32 1.5, %v59
  %v61 = vmul.f32 %v56, %v60
  %v62 = vmul.f32 %v55, %v61
  %vm63 = vcmp.eq.f32.partialorder %v55, inf
  %v64 = vsel %vm63, %v55, %v62
  %vm65 = vcmp.eq.f32.partialorder %v55, 0.0
  %v66 = vand.u32 %v55, 2147483648
  %v67 = vsel %vm65, %v66, %v64
  %v68 = vadd.f32 %v67, 1e-05
  %v69 = vrsqrt.pop %v68
  %v70 = vmul.f32 %v69, %v68
  %v71 = vmul.f32 %v70, %v69
  %v72 = vmul.f32 0.5, %v71
  %v73 = vsub.f32 1.5, %v72
  %v74 = vmul.f32 %v69, %v73
  %vm75 = vweird.f32 %v68
  %vm76 = vweird.f32 %v69
  %vm77 = vmor %vm75, %vm76
  %v78 = vsel %vm77, %v69, %v74
  %v79 = vld [vmem:[%s1] sm:$0x3]
  %v80 = vmul.f32 %v79, %v78
  %v81 = vmul.f32 %v51, %v80
  %v83 = vrot.slane %v81, 7
  %v85 = vsub.f32 %v79, %v83
  %87 = vrot.lane.b32.xlu0 %v80, 32
  %v88 = vpop.permute.xlu0 %87
  %90 = vrot.lane.b32.xlu0 %v80, 64
  %v91 = vpop.permute.xlu0 %90
  %93 = vrot.lane.b32.xlu0 %v80, 96
  %v94 = vpop.permute.xlu0 %93
  %vm96 = vcmask 261120
  %v97 = vsel %vm96, %v80, %v88
  %vm98 = vcmask 523264
  %v99 = vsel %vm98, %v97, %v91
  %vm100 = vcmask 785408
  %v101 = vsel %vm100, %v99, %v94
  %103 = vrot.lane.b32.xlu0 %v85, 32
  %v104 = vpop.permute.xlu0 %103
  %106 = vrot.lane.b32.xlu0 %v85, 64
  %v107 = vpop.permute.xlu0 %106
  %109 = vrot.lane.b32.xlu0 %v85, 96
  %v110 = vpop.permute.xlu0 %109
  %v112 = vsel %vm96, %v85, %v104
  %v113 = vsel %vm98, %v112, %v107
  %v114 = vsel %vm100, %v113, %v110
  %v115 = vperm.slane %v101, 0
  %v116 = vmul.f32 %v11, %v115
  %v117 = vperm.slane %v114, 1
  %v118 = vadd.f32 %v116, %v117
  %119 = vst [vmem:[%s2] sm:$0xff] %v118
  // Predicated region
  $region10: #{batch_norm_forward.1} parent=0 // pred_check
    _
  $region11: #{batch_norm_forward.1} parent=0 // pred_check_branch
    %121 = sbr.rel (0) target = $region13
  $region12: #{batch_norm_forward.1} parent=0 // pred_region
    _
  $region13: #{batch_norm_forward.1} parent=0 // pred_fallthru
    _
  // Predicated region
  $region14: #{batch_norm_forward.1} parent=0 // pred_check
    _
  $region15: #{batch_norm_forward.1} parent=0 // pred_check_branch
    %123 = sbr.rel (0) target = $region17
  $region16: #{batch_norm_forward.1} parent=0 // pred_region
    _
  $region17: #{batch_norm_forward.1} parent=0 // pred_fallthru
    _

</llo_original>
